<compile_context>
chip_gen: v6e
topology: v6e:2x2x1
jax: 0.10.0
libtpu: 0.0.40
codegen_flags: <defaults>
</compile_context>

<pallas_src>
import math
import functools

import jax
import jax.numpy as jnp
from jax.experimental import pallas as pl
from jax.experimental.pallas import tpu as pltpu


def _round_up(a: int, b: int) -> int:
    return (a + b - 1) // b * b


def _binary_linear_kernel(x_ref, w_ref, b_ref, g_ref, o_ref, xn_ref, *, eps, cache_xn):
    # x_ref:  (tm, K)   VMEM  bf16 input row tile
    # w_ref:  (K, tn)   VMEM  int8 pre-binarized, pre-transposed weight tile
    # b_ref:  (1, tn)   VMEM  f32 bias tile
    # g_ref:  (1, K)    VMEM  f32 gamma * exp(log_scale)  (alpha folded in)
    # o_ref:  (tm, tn)  VMEM  output tile
    # xn_ref: (tm, K)   VMEM  bf16 scratch: normalized activations
    def _rmsnorm():
        x = x_ref[...].astype(jnp.float32)
        ms = jnp.mean(x * x, axis=-1, keepdims=True)
        xn_ref[...] = (x * jax.lax.rsqrt(ms + eps) * g_ref[...]).astype(jnp.bfloat16)

    if cache_xn:
        # N axis is innermost & "arbitrary": compute x_n once per row tile (j == 0)
        # and reuse the scratch for all output tiles of this row tile.
        pl.when(pl.program_id(1) == 0)(_rmsnorm)
    else:
        # N axis may be core-split ("parallel"): compute unconditionally so a core
        # starting at j > 0 never reads an uninitialized scratch.
        _rmsnorm()

    # int8 {-1,0,+1} -> bf16 (exact); two-step via f32 for robust Mosaic lowering.
    w = w_ref[...].astype(jnp.float32).astype(jnp.bfloat16)
    acc = jnp.dot(xn_ref[...], w, preferred_element_type=jnp.float32)
    o_ref[...] = (acc + b_ref[...]).astype(o_ref.dtype)


def prepare_params(weight, bias, gamma, log_scale):
    """One-time parameter prep (per weight update), hoisted out of the forward path.

    Returns (w_t_int8[(K, N_pad)], bias2d[(1, N_pad)] f32, g2d[(1, K)] f32, n_out).
    """
    n_out, k = weight.shape
    n_pad = _round_up(n_out, 128)                       # lane-dense output columns
    # sign() of the *f32* weight (exact, matches torch.sign), stored as int8.
    w_sign = jnp.sign(weight.astype(jnp.float32)).astype(jnp.int8)
    w_t = w_sign.T                                      # (K, N): MXU-canonical layout
    b = bias.astype(jnp.float32)
    if n_pad != n_out:
        w_t = jnp.pad(w_t, ((0, 0), (0, n_pad - n_out)))   # zero cols -> zero output
        b = jnp.pad(b, (0, n_pad - n_out))
    alpha = jnp.exp(log_scale.astype(jnp.float32))[0]   # per-tensor scale
    g2d = (gamma.astype(jnp.float32) * alpha).reshape(1, k)  # fold alpha into gamma
    return w_t, b.reshape(1, n_pad), g2d, n_out


def _vmem_limit_bytes(tm, tn, k, out_itemsize):
    # Per-step footprint; double-buffer factors counted exactly once.
    step = (2 * tm * k * 2            # bf16 x tile (double-buffered)
            + 2 * k * tn * 1          # int8 weight tile (double-buffered)
            + 2 * tm * tn * out_itemsize   # output tile (double-buffered)
            + tm * k * 2              # bf16 x_n scratch
            + 2 * (tn * 4 + k * 4))   # bias + gamma tiles
    try:
        phys = int(pltpu.get_tpu_info().vmem_capacity_bytes)
    except Exception:
        phys = 64 * 1024 * 1024       # conservative (v7x-sized) fallback
    cap = int(phys * 0.8)             # leave headroom for compiler scratch/semaphores
    return min(cap, max(32 * 1024 * 1024, int(step * 1.25)))


def binary_linear(x, w_t, bias2d, g2d, n_out, *, eps=1e-8, tm_max=512, tn_max=512,
                  out_dtype=jnp.float32):
    """Fused RMSNorm + binarized linear. x: (..., in_features).

    w_t / bias2d / g2d / n_out come from prepare_params() (prep hoisted out of
    the per-call path).
    """
    k, n_pad = w_t.shape
    lead = x.shape[:-1]
    assert x.shape[-1] == k, "in_features mismatch"

    x2 = x.reshape(-1, k).astype(jnp.bfloat16)   # halve x DMA / VMEM footprint
    m = x2.shape[0]

    # Row tile: up to tm_max (512, multiple of 256 for the v6e/v7x MXU).
    tm = tm_max if m >= tm_max else _round_up(m, 8)
    m_pad = _round_up(m, tm)
    if m_pad != m:
        x2 = jnp.pad(x2, ((0, m_pad - m), (0, 0)))

    # Output tile: largest multiple of 128 <= tn_max that divides n_pad (lane-dense).
    tn = max(128, (min(tn_max, n_pad) // 128) * 128)
    while n_pad % tn:
        tn -= 128

    grid = (m_pad // tm, n_pad // tn)
    cache_xn = grid[0] >= 2
    # >=2 row tiles: shard M across cores, keep the j==0 xn cache.
    # 1 row tile (decode): shard N across cores instead so both v7x TCs are busy.
    dims = ("parallel", "arbitrary") if cache_xn else ("arbitrary", "parallel")

    vmem_limit = _vmem_limit_bytes(tm, tn, k, jnp.dtype(out_dtype).itemsize)

    out = pl.pallas_call(
        functools.partial(_binary_linear_kernel, eps=eps, cache_xn=cache_xn),
        out_shape=jax.ShapeDtypeStruct((m_pad, n_pad), out_dtype),
        grid=grid,
        in_specs=[
            pl.BlockSpec((tm, k), lambda i, j: (i, 0)),      # x rows (bf16)
            pl.BlockSpec((k, tn), lambda i, j: (0, j)),      # int8 sign(W)^T, (K, N)
            pl.BlockSpec((1, tn), lambda i, j: (0, j)),      # bias
            pl.BlockSpec((1, k), lambda i, j: (0, 0)),       # gamma * alpha
        ],
        out_specs=pl.BlockSpec((tm, tn), lambda i, j: (i, j)),
        scratch_shapes=[pltpu.VMEM((tm, k), jnp.bfloat16)],
        compiler_params=pltpu.CompilerParams(
            dimension_semantics=dims,
            vmem_limit_bytes=vmem_limit),
    )(x2, w_t, bias2d, g2d)

    return out[:m, :n_out].reshape(*lead, n_out)


def init_params(key, in_features, out_features):
    """Deterministic init matching the PyTorch module's __init__."""
    kw, kb = jax.random.split(key)
    bound = 1.0 / math.sqrt(in_features)   # kaiming_uniform_(a=sqrt(5)) on (out, in)
    weight = jax.random.uniform(
        kw, (out_features, in_features), jnp.float32, -bound, bound)
    bias = jax.random.uniform(kb, (out_features,), jnp.float32, -bound, bound)
    gamma = jnp.ones((in_features,), jnp.float32)           # RMSNorm weight
    log_scale = jnp.full((1,), math.log(1.0 / math.sqrt(in_features)), jnp.float32)
    return weight, bias, gamma, log_scale


def reference_f32(x, weight, bias, gamma, log_scale, eps=1e-8):
    """Pure-f32 module semantics."""
    xf = x.astype(jnp.float32)
    ms = jnp.mean(xf * xf, axis=-1, keepdims=True)
    x_n = xf * jax.lax.rsqrt(ms + eps) * gamma
    w_q = jnp.sign(weight.astype(jnp.float32)) * jnp.exp(log_scale[0])
    return x_n @ w_q.T + bias


def reference_kernel_precision(x, weight, bias, gamma, log_scale, eps=1e-8):
    """Reference mimicking the kernel's operand precision (bf16 x / x_n, f32 acc)."""
    alpha = jnp.exp(log_scale.astype(jnp.float32))[0]
    xb = x.astype(jnp.bfloat16).astype(jnp.float32)
    ms = jnp.mean(xb * xb, axis=-1, keepdims=True)
    x_n = (xb * jax.lax.rsqrt(ms + eps) * (gamma * alpha)
           ).astype(jnp.bfloat16).astype(jnp.float32)
    s = jnp.sign(weight.astype(jnp.float32))
    return x_n @ s.T + bias


if __name__ == "__main__":
    batch, seq, in_features, out_features = 2, 8, 32, 64

    key = jax.random.PRNGKey(0)
    kx, kp = jax.random.split(key)
    x = jax.random.normal(kx, (batch, seq, in_features), jnp.float32)
    weight, bias, gamma, log_scale = init_params(kp, in_features, out_features)

    # Full-weight prep (sign -> int8, transpose, pad, alpha-fold) done once, outside
    # the per-call forward path.
    w_t, b2, g2, n_out = prepare_params(weight, bias, gamma, log_scale)

    y = binary_linear(x, w_t, b2, g2, n_out)
    y = jax.block_until_ready(y)
    assert y.shape == (batch, seq, out_features)

    # Tight check against a reference with matching operand precision.
    y_ref_k = reference_kernel_precision(x, weight, bias, gamma, log_scale)
    assert jnp.allclose(y, y_ref_k, atol=1e-3, rtol=1e-3), "mismatch vs kernel-precision ref"

    # Loose check against pure-f32 module semantics (bf16 operand rounding only).
    y_ref = reference_f32(x, weight, bias, gamma, log_scale)
    assert jnp.allclose(y, y_ref, atol=5e-2, rtol=5e-2), "mismatch vs f32 reference"

    print("KERNEL_OK")
</pallas_src>

<mosaic_0001>
module attributes {stable_mosaic.version = 11 : i64} {
  func.func @_binary_linear_kernel(%arg0: i32, %arg1: i32, %arg2: memref<16x32xbf16, #tpu.memory_space<vmem>>, %arg3: memref<32x128xi8, #tpu.memory_space<vmem>>, %arg4: memref<1x128xf32, #tpu.memory_space<vmem>>, %arg5: memref<1x32xf32, #tpu.memory_space<vmem>>, %arg6: memref<16x128xf32, #tpu.memory_space<vmem>>, %arg7: memref<16x32xbf16, #tpu.memory_space<vmem>>) attributes {dimension_semantics = [#tpu.dimension_semantics<arbitrary>, #tpu.dimension_semantics<parallel>], iteration_bounds = array<i64: 1, 1>, scalar_prefetch = 0 : i64, scratch_operands = 1 : i64, tpu.core_type = #tpu.core_type<tc>, window_params = [{transform_indices = @transform_0, window_bounds = array<i64: 16, 32>}, {transform_indices = @transform_1, window_bounds = array<i64: 32, 128>}, {transform_indices = @transform_2, window_bounds = array<i64: 1, 128>}, {pipeline_mode = #tpu.pipeline_mode<synchronous>, transform_indices = @transform_3, window_bounds = array<i64: 1, 32>}, {transform_indices = @transform_4, window_bounds = array<i64: 16, 128>}]} {
    %c0 = arith.constant 0 : index
    %c0_0 = arith.constant 0 : index
    %0 = vector.load %arg2[%c0, %c0_0] : memref<16x32xbf16, #tpu.memory_space<vmem>>, vector<16x32xbf16>
    %1 = arith.extf %0 : vector<16x32xbf16> to vector<16x32xf32>
    %2 = arith.mulf %1, %1 : vector<16x32xf32>
    %cst = arith.constant dense<0.000000e+00> : vector<16xf32>
    %3 = vector.multi_reduction <add>, %2, %cst [1] : vector<16x32xf32> to vector<16xf32>
    %4 = vector.shape_cast %3 : vector<16xf32> to vector<16x1xf32>
    %cst_1 = arith.constant 3.200000e+01 : f32
    %5 = vector.broadcast %cst_1 : f32 to vector<16x1xf32>
    %6 = arith.divf %4, %5 : vector<16x1xf32>
    %cst_2 = arith.constant 9.99999993E-9 : f32
    %7 = vector.broadcast %cst_2 : f32 to vector<16x1xf32>
    %8 = arith.addf %6, %7 : vector<16x1xf32>
    %9 = math.rsqrt %8 : vector<16x1xf32>
    %10 = vector.broadcast %9 : vector<16x1xf32> to vector<16x32xf32>
    %11 = arith.mulf %1, %10 : vector<16x32xf32>
    %c0_3 = arith.constant 0 : index
    %c0_4 = arith.constant 0 : index
    %12 = vector.load %arg5[%c0_3, %c0_4] : memref<1x32xf32, #tpu.memory_space<vmem>>, vector<1x32xf32>
    %13 = vector.broadcast %12 : vector<1x32xf32> to vector<16x32xf32>
    %14 = arith.mulf %11, %13 : vector<16x32xf32>
    %15 = arith.truncf %14 : vector<16x32xf32> to vector<16x32xbf16>
    %c0_5 = arith.constant 0 : index
    %c0_6 = arith.constant 0 : index
    %16 = vector.load %arg7[%c0_5, %c0_6] : memref<16x32xbf16, #tpu.memory_space<vmem>>, vector<16x32xbf16>
    tpu.vector_store %arg7[%c0_5, %c0_6], %15 {strides = array<i32>} : memref<16x32xbf16, #tpu.memory_space<vmem>>, vector<16x32xbf16>,
    %c0_7 = arith.constant 0 : index
    %c0_8 = arith.constant 0 : index
    %17 = vector.load %arg3[%c0_7, %c0_8] : memref<32x128xi8, #tpu.memory_space<vmem>>, vector<32x128xi8>
    %18 = arith.sitofp %17 : vector<32x128xi8> to vector<32x128xf32>
    %19 = arith.truncf %18 : vector<32x128xf32> to vector<32x128xbf16>
    %c0_9 = arith.constant 0 : index
    %c0_10 = arith.constant 0 : index
    %20 = vector.load %arg7[%c0_9, %c0_10] : memref<16x32xbf16, #tpu.memory_space<vmem>>, vector<16x32xbf16>
    %cst_11 = arith.constant dense<0.000000e+00> : vector<16x128xf32>
    %21 = tpu.matmul %20, %19, %cst_11 {dimension_numbers = #tpu.dot_dimension_numbers<[1], [0], [0], [1], [0, 0, 1, 1], [], []>} : vector<16x32xbf16>, vector<32x128xbf16>, vector<16x128xf32> -> vector<16x128xf32>
    %c0_12 = arith.constant 0 : index
    %c0_13 = arith.constant 0 : index
    %22 = vector.load %arg4[%c0_12, %c0_13] : memref<1x128xf32, #tpu.memory_space<vmem>>, vector<1x128xf32>
    %23 = vector.broadcast %22 : vector<1x128xf32> to vector<16x128xf32>
    %24 = arith.addf %21, %23 : vector<16x128xf32>
    %c0_14 = arith.constant 0 : index
    %c0_15 = arith.constant 0 : index
    %25 = vector.load %arg6[%c0_14, %c0_15] : memref<16x128xf32, #tpu.memory_space<vmem>>, vector<16x128xf32>
    tpu.vector_store %arg6[%c0_14, %c0_15], %24 {strides = array<i32>} : memref<16x128xf32, #tpu.memory_space<vmem>>, vector<16x128xf32>,
    return
  }
  func.func @transform_0(%arg0: i32, %arg1: i32) -> (i32, i32) {
    %c0_i32 = arith.constant 0 : i32
    %c0_i32_0 = arith.constant 0 : i32
    return %arg0, %c0_i32 : i32, i32
  }
  func.func @transform_1(%arg0: i32, %arg1: i32) -> (i32, i32) {
    %c0_i32 = arith.constant 0 : i32
    %c0_i32_0 = arith.constant 0 : i32
    return %c0_i32, %arg1 : i32, i32
  }
  func.func @transform_2(%arg0: i32, %arg1: i32) -> (i32, i32) {
    %c0_i32 = arith.constant 0 : i32
    %c0_i32_0 = arith.constant 0 : i32
    return %c0_i32, %arg1 : i32, i32
  }
  func.func @transform_3(%arg0: i32, %arg1: i32) -> (i32, i32) {
    %c0_i32 = arith.constant 0 : i32
    %c0_i32_0 = arith.constant 0 : i32
    %c0_i32_1 = arith.constant 0 : i32
    return %c0_i32, %c0_i32_0 : i32, i32
  }
  func.func @transform_4(%arg0: i32, %arg1: i32) -> (i32, i32) {
    %c0_i32 = arith.constant 0 : i32
    return %arg0, %arg1 : i32, i32
  }
}

</mosaic_0001>

<llo_original>
// kernel: tpu_custom_call.1
$region0: #{tpu_custom_call.1}
  #allocation0 [shape = 'u32[]', space=smem, size = 0x4, offset = 0x4, fixed_abs, tag = 'smem constant byte address 0x4 - core index']
  #allocation1 [shape = 'u32[144,128]{1,0:T(1,128)}', space=vmem, size = 0x12000, scoped, tag = 'internal scratch']
  #allocation2 [shape = 'bf16[16,32]{1,0:T(8,128)(2,1)}', space=vmem, size = 0x1000, scoped, tag = 'scratch operand']
  %s0 = inlined_call_operand.hbm [shape: bf16[16,32], index: 0, kind: input, shape index: {}]
  %s1 = inlined_call_operand.hbm [shape: s8[32,128], index: 1, kind: input, shape index: {}]
  %s2 = inlined_call_operand.vmem [shape: f32[1,128], index: 2, kind: input, shape index: {}]
  %s3 = inlined_call_operand.vmem [shape: f32[1,32], index: 3, kind: input, shape index: {}]
  %s4 = inlined_call_operand.hbm [shape: f32[16,128], index: 4, kind: output, shape index: {}]
  %s5 = sld [smem:[#allocation0]]
  $region34: #{tpu_custom_call.1} parent=0
    _
  %s7 = ssub.s32 1, %s5
  %s8 = scalar_select 0, %s7, %s5
  $region1: #{tpu_custom_call.1} parent=0
    #allocation3 [shape = 'u8[4096]{0}', space=vmem, size = 0x1000, scoped, tag = 'input window, operand 0, single buffered']
    #allocation4 [shape = 's32[1]{0}', space=sflag, size = 0x4, scoped, tag = 'scoped memory for tpu_custom_call.1']
    #allocation5 [shape = 's32[1]{0}', space=sflag, size = 0x4, scoped, tag = 'scoped memory for tpu_custom_call.1']
    #allocation6 [shape = 'u8[4096]{0}', space=vmem, size = 0x1000, scoped, tag = 'input window, operand 1, single buffered']
    #allocation7 [shape = 's32[1]{0}', space=sflag, size = 0x4, scoped, tag = 'scoped memory for tpu_custom_call.1']
    #allocation8 [shape = 'u8[8192]{0}', space=vmem, size = 0x2000, scoped, tag = 'output window, operand 0, single buffered']
    %9 = vsyncpa [#allocation4], 0
    %10 = vsyncpa [#allocation7], 0
    %11 = vsyncpa [#allocation5], 0
    // Predicated region
    $region2: #{tpu_custom_call.1} parent=1 // pred_check
      _
    $region3: #{tpu_custom_call.1} parent=1 // pred_check_branch
      %13 = sbr.rel (0) target = $region5
    $region4: #{tpu_custom_call.1} parent=1 // pred_region
      %s15 = ssub.s32 128, 128
      %16 = vsyncadd [#allocation4], %s15
      %s17 = sshll.u32 [#allocation3], 4
      %s18 = int_to_ptr.vmem [resolvable:$true] %s17
      %23 = dma.hbm_to_vmem [thread:$0]  %s0, 128, %s18, [#allocation4], 64, 64, 4
    $region5: #{tpu_custom_call.1} parent=1 // pred_fallthru
      _
    // Predicated region
    $region6: #{tpu_custom_call.1} parent=1 // pred_check
      _
    $region7: #{tpu_custom_call.1} parent=1 // pred_check_branch
      %25 = sbr.rel (0) target = $region9
    $region8: #{tpu_custom_call.1} parent=1 // pred_region
      %s27 = ssub.s32 128, 128
      %28 = vsyncadd [#allocation7], %s27
      %s30 = sshll.u32 [#allocation6], 4
      %s31 = int_to_ptr.vmem [resolvable:$true] %s30
      %33 = dma.hbm_to_vmem [thread:$0]  %s1, 128, %s31, [#allocation7]
    $region9: #{tpu_custom_call.1} parent=1 // pred_fallthru
      _
    // Predicated region
    $region10: #{tpu_custom_call.1} parent=1 // pred_check
      _
    $region11: #{tpu_custom_call.1} parent=1 // pred_check_branch
      %35 = sbr.rel (0) target = $region13
    $region12: #{tpu_custom_call.1} parent=1 // pred_region
      _
    $region13: #{tpu_custom_call.1} parent=1 // pred_fallthru
      _
    // Predicated region
    $region14: #{tpu_custom_call.1} parent=1 // pred_check
      _
    $region15: #{tpu_custom_call.1} parent=1 // pred_check_branch
      %37 = sbr.rel (0) target = $region17
    $region16: #{tpu_custom_call.1} parent=1 // pred_region
      _
    $region17: #{tpu_custom_call.1} parent=1 // pred_fallthru
      _
    // Predicated region
    $region18: #{tpu_custom_call.1} parent=1 // pred_check
      _
    $region19: #{tpu_custom_call.1} parent=1 // pred_check_branch
      %39 = sbr.rel (0) target = $region21
    $region20: #{tpu_custom_call.1} parent=1 // pred_region
      %40 = dma.done [#allocation4], 128
    $region21: #{tpu_custom_call.1} parent=1 // pred_fallthru
      _
    // Predicated region
    $region22: #{tpu_custom_call.1} parent=1 // pred_check
      _
    $region23: #{tpu_custom_call.1} parent=1 // pred_check_branch
      %42 = sbr.rel (0) target = $region25
    $region24: #{tpu_custom_call.1} parent=1 // pred_region
      %43 = dma.done [#allocation7], 128
    $region25: #{tpu_custom_call.1} parent=1 // pred_fallthru
      _
    %v45 = vld [vmem:[#allocation3] sm:$0xf]
    %v46 = vld [vmem:[#allocation3 + $0x4] sm:$0xf]
    %v47 = vunpack.c.l.bf16 %v45
    %v48 = vunpack.c.l.bf16 %v46
    %v49 = vmul.f32 %v47, %v47
    %v50 = vmul.f32 %v48, %v48
    %vm51 = vcmask 261120
    %v52 = vsel %vm51, %v49, 0.0
    %53 = vadd.xlane.f32.xlu0 %v52
    %v54 = vpop.xlane.xlu0 %53
    %v55 = vsel %vm51, %v50, 0.0
    %56 = vadd.xlane.f32.xlu0 %v55
    %v57 = vpop.xlane.xlu0 %56
    %v58 = vrcp.pop 32.0
    %v59 = vmul.f32 %v54, %v58
    %v60 = vmul.f32 %v57, %v58
    %v61 = vadd.f32 %v59, 1e-08
    %v62 = vadd.f32 %v60, 1e-08
    %v63 = vrsqrt.pop %v61
    %v64 = vrsqrt.pop %v62
    %v65 = vmul.f32 %v47, %v63
    %v66 = vmul.f32 %v48, %v64
    %v67 = vld [vmem:[%s3] sm:$0x1]
    %v69 = vlaneseq
    %v70 = vshrl.u32 %v69, 7
    %v71 = vsub.s32 0, %v70
    %v72 = vrot.slane %v67, %v71
    %v74 = vmul.f32 %v65, %v72
    %v75 = vmul.f32 %v66, %v72
    %v76 = vpack.c.bf16 %v75, %v74
    %v78 = vunpack.c.l.b16 %v76
    %v79 = vunpack.c.h.b16 %v76
    %v80 = vpack.c.b16 %v78, %v78
    %v81 = vpack.c.b16 %v79, %v79
    %vm84 = vcmask 257024
    %85 = vst.msk [vmem:[#allocation2] sm:$0xf] %vm84, %v80
    %86 = vst.msk [vmem:[#allocation2 + $0x4] sm:$0xf] %vm84, %v81
    %v87 = vld [vmem:[#allocation6] sm:$0xff]
    %v88 = vunpack.c.l.s8.bf16 %v87
    %v89 = vunpack.c.h.s8.bf16 %v87
    %v90 = vld [vmem:[#allocation2] sm:$0xf]
    %v91 = vld [vmem:[#allocation2 + $0x4] sm:$0xf]
    %v92 = vld [vmem:[%s2] sm:$0x1]
    %v94 = vlaneseq
    %v95 = vshrl.u32 %v94, 7
    %v96 = vsub.s32 0, %v95
    %v97 = vrot.slane %v92, %v96
    %v101 = vunpack.c.l.b16 %v90
    %v102 = vunpack.c.l.b16 %v91
    %v103 = vpack.c.b16 %v102, %v101
    %v105 = vsel %vm51, %v103, 0
    %107 = vmatprep.subr.bf16.mxu0 0
    %108 = vmatpush1.bf16.msra.mxu0 0
    %109 = vmatprep.subr.bf16.mxu0 0
    %110 = vmatpush1.bf16.msra.mxu0 0
    %111 = vmatprep.subr.bf16.mxu0 0
    %112 = vmatpush1.bf16.msra.mxu0 0
    %113 = vmatprep.subr.bf16.mxu0 0
    %114 = vmatpush1.bf16.msra.mxu0 0
    %115 = vmatprep.subr.bf16.mxu0 0
    %116 = vmatpush1.bf16.msra.mxu0 0
    %117 = vmatprep.subr.bf16.mxu0 0
    %118 = vmatpush1.bf16.msra.mxu0 0
    %119 = vmatprep.subr.bf16.mxu0 0
    %120 = vmatpush1.bf16.msra.mxu0 %v89
    %121 = vmatprep.subr.bf16.mxu0 0
    %122 = vmatpush1.bf16.msra.mxu0 %v88
    %123 = vmatprep.subr.bf16.mxu0 0
    %124 = vmatpush2.bf16.msra.mxu0 0
    %125 = vmatprep.subr.bf16.mxu0 0
    %126 = vmatpush2.bf16.msra.mxu0 0
    %127 = vmatprep.subr.bf16.mxu0 0
    %128 = vmatpush2.bf16.msra.mxu0 0
    %129 = vmatprep.subr.bf16.mxu0 0
    %130 = vmatpush2.bf16.msra.mxu0 0
    %131 = vmatprep.subr.bf16.mxu0 0
    %132 = vmatpush2.bf16.msra.mxu0 0
    %133 = vmatprep.subr.bf16.mxu0 0
    %134 = vmatpush2.bf16.msra.mxu0 0
    %135 = vmatprep.subr.bf16.mxu0 0
    %136 = vmatpush2.bf16.msra.mxu0 0
    %137 = vmatprep.subr.bf16.mxu0 0
    %138 = vmatpush2.bf16.msra.mxu0 0
    %139 = vmatprep.mubr.bf16.mxu0 0
    %140 = vmatmul.mubr.bf16.gmra.mxu0 %v105
    %v141 = vpop.f32.mrf.mxu0
    %v142 = vadd.f32 %v97, %v141
    %v143 = vpop.f32.mrf.mxu0
    %v144 = vpop.f32.mrf.mxu0
    %v145 = vadd.f32 %v97, %v144
    %v146 = vpop.f32.mrf.mxu0
    %147 = vdwg.mxu0
    %148 = vst [vmem:[#allocation8] sm:$0xff] %v142
    %149 = vst [vmem:[#allocation8 + $0x8] sm:$0xff] %v145
    // Predicated region
    $region26: #{tpu_custom_call.1} parent=1 // pred_check
      _
    $region27: #{tpu_custom_call.1} parent=1 // pred_check_branch
      %151 = sbr.rel (0) target = $region29
    $region28: #{tpu_custom_call.1} parent=1 // pred_region
      %s153 = ssub.s32 256, 256
      %154 = vsyncadd [#allocation5], %s153
      %s155 = sshll.u32 [#allocation8], 4
      %s156 = int_to_ptr.vmem [resolvable:$true] %s155
      %161 = dma.vmem_to_hbm [thread:$0]  %s156, 256, %s4, [#allocation5], 128, 128, 8
    $region29: #{tpu_custom_call.1} parent=1 // pred_fallthru
      _
    // Predicated region
    $region30: #{tpu_custom_call.1} parent=1 // pred_check
      _
    $region31: #{tpu_custom_call.1} parent=1 // pred_check_branch
      %163 = sbr.rel (0) target = $region33
    $region32: #{tpu_custom_call.1} parent=1 // pred_region
      %164 = dma.done [#allocation5], 256
    $region33: #{tpu_custom_call.1} parent=1 // pred_fallthru
      _
    %165 = vsyncpa [#allocation4], 1
    %166 = vsyncpa [#allocation7], 1
    %167 = vsyncpa [#allocation5], 1

</llo_original>
